<compile_context>
chip_gen: v6e
topology: v6e:2x2x1
jax: 0.10.0
libtpu: 0.0.40
codegen_flags: <defaults>
</compile_context>

<pallas_src>
import math

import jax
import jax.numpy as jnp
from jax.experimental import pallas as pl
from jax.experimental.pallas import tpu as pltpu


def _round_up(n, m):
    return ((n + m - 1) // m) * m


def _cdiv(a, b):
    return -(-a // b)


def _mlp_kernel(x_ref, c_ref, w1a_ref, w1b_ref, b1_ref, w2_ref, b2_ref, o_ref):
    # linear1 with the [x | context] concat fused:
    #   [x | c] @ [[w1a], [w1b]] == x @ w1a + c @ w1b     (MXU, f32 accumulation)
    h = jnp.dot(x_ref[...], w1a_ref[...], preferred_element_type=jnp.float32)
    h = h + jnp.dot(c_ref[...], w1b_ref[...], preferred_element_type=jnp.float32)
    # Bias + ReLU in f32 on the VPU (works on all generations incl. v5e).
    h = jnp.maximum(h + b1_ref[...], 0.0)
    # TODO(synk): training-mode dropout would need pltpu.prng_seed + stateful_bernoulli;
    # eval-mode nn.Dropout is the identity, matching PyTorch inference.
    # linear2 on the MXU (K = h_pad, N = 1) instead of transposing the full [b_tile, 128]
    # h through the XLU; only the tiny [b_tile, 1] result column gets relaid out to the
    # lane-dense [1, b_tile] output row (unmasked full-width stores).
    o_col = jnp.dot(h, w2_ref[...], preferred_element_type=jnp.float32)   # [b_tile, 1]
    o_ref[...] = (jnp.transpose(o_col) + b2_ref[0]).astype(o_ref.dtype)   # [1, b_tile]


def simple_semantic_relevance(x, context, w1, b1, w2, b2, *, matmul_dtype=None,
                              max_batch_tile=4096):
    """Pallas implementation of SimpleSemanticRelevance.forward (eval mode).

    x, context : [B, E]
    w1 : [2E, H], b1 : [H]   (layer1, stored as [in_features, out_features])
    w2 : [H, 1],  b2 : [1]   (layer2)
    matmul_dtype : MXU input dtype. Default None -> use x.dtype (no extra wrapper-side
        astype pass). Pass bf16 activations (or matmul_dtype=jnp.bfloat16) for a
        reduced-bandwidth MXU path with f32 accumulation.
    returns : [B, 1] float32
    """
    B, E = x.shape
    H = w1.shape[1]
    if matmul_dtype is None:
        matmul_dtype = x.dtype

    # Split layer1's weight so the [B, 2E] concat never materializes in HBM.
    w1a, w1b = w1[:E], w1[E:]                          # each [E, H] (tiny, resident)

    # Zero-pad H to a full lane width (numerically a no-op: ReLU(0) * 0 == 0).
    h_pad = _round_up(max(H, 128), 128)
    if h_pad != H:
        w1a = jnp.pad(w1a, ((0, 0), (0, h_pad - H)))
        w1b = jnp.pad(w1b, ((0, 0), (0, h_pad - H)))
        b1 = jnp.pad(b1, ((0, h_pad - H),))
        w2 = jnp.pad(w2, ((0, h_pad - H), (0, 0)))

    # Batch tile: as big as comfortably fits the (raised) scoped-VMEM budget, but split
    # so the grid has >= 2 "parallel" steps when possible (both v7x TensorCores).
    # No input padding: grid = cdiv(B, b_tile), Pallas handles the ragged last block.
    b_tile = min(max_batch_tile, _round_up(max(1, _cdiv(B, 2)), 128))
    num_tiles = _cdiv(B, b_tile)
    out_cols = num_tiles * b_tile          # lane-dense, unmasked stores on every block

    x_in = x.astype(matmul_dtype)
    c_in = context.astype(matmul_dtype)
    w1a_in = w1a.astype(matmul_dtype)
    w1b_in = w1b.astype(matmul_dtype)
    b1_row = b1.reshape(1, h_pad).astype(jnp.float32)
    w2_col = w2.astype(jnp.float32)                    # [h_pad, 1]
    b2_s = b2.astype(jnp.float32)                      # [1] -> SMEM scalar

    out = pl.pallas_call(
        _mlp_kernel,
        out_shape=jax.ShapeDtypeStruct((1, out_cols), jnp.float32),
        grid=(num_tiles,),
        in_specs=[
            pl.BlockSpec((b_tile, E), lambda i: (i, 0)),          # x tile
            pl.BlockSpec((b_tile, E), lambda i: (i, 0)),          # context tile
            pl.BlockSpec((E, h_pad), lambda i: (0, 0)),           # w1a (resident)
            pl.BlockSpec((E, h_pad), lambda i: (0, 0)),           # w1b (resident)
            pl.BlockSpec((1, h_pad), lambda i: (0, 0)),           # b1  (resident)
            pl.BlockSpec((h_pad, 1), lambda i: (0, 0)),           # w2  (resident)
            pl.BlockSpec(memory_space=pltpu.MemorySpace.SMEM),    # b2 scalar in SMEM
        ],
        out_specs=pl.BlockSpec((1, b_tile), lambda i: (0, i)),    # lane-dense output row
        compiler_params=pltpu.CompilerParams(
            dimension_semantics=("parallel",),          # shard batch over TCs (v7x)
            vmem_limit_bytes=32 * 1024 * 1024,          # covers v5e's 16 MiB default
        ),
    )(x_in, c_in, w1a_in, w1b_in, b1_row, w2_col, b2_s)

    # Only the first B lanes are valid (ragged last block / lane padding) — slice here.
    return out[0, :B][:, None]


def init_params(key, input_size, hidden_size):
    """Deterministic PyTorch-style (Kaiming-uniform-ish) Linear init."""
    k1, k2, k3, k4 = jax.random.split(key, 4)
    fan1 = input_size * 2
    bound1 = 1.0 / math.sqrt(fan1)
    w1 = jax.random.uniform(k1, (fan1, hidden_size), jnp.float32, -bound1, bound1)
    b1 = jax.random.uniform(k2, (hidden_size,), jnp.float32, -bound1, bound1)
    fan2 = hidden_size
    bound2 = 1.0 / math.sqrt(fan2)
    w2 = jax.random.uniform(k3, (hidden_size, 1), jnp.float32, -bound2, bound2)
    b2 = jax.random.uniform(k4, (1,), jnp.float32, -bound2, bound2)
    return w1, b1, w2, b2


if __name__ == "__main__":
    batch = 2
    input_size = 16     # embedding_size
    hidden_size = 32

    key = jax.random.PRNGKey(0)
    kx, kc, kp = jax.random.split(key, 3)
    x = jax.random.normal(kx, (batch, input_size), jnp.float32)
    context = jax.random.normal(kc, (batch, input_size), jnp.float32)
    w1, b1, w2, b2 = init_params(kp, input_size, hidden_size)

    def ref_fwd(xa, ca):
        xc = jnp.concatenate([xa, ca], axis=1)
        return jnp.maximum(xc @ w1 + b1, 0.0) @ w2 + b2

    # Small-batch f32 path (single ragged block).
    out = jax.block_until_ready(simple_semantic_relevance(x, context, w1, b1, w2, b2))
    assert out.shape == (batch, 1)
    assert jnp.allclose(out, ref_fwd(x, context), atol=1e-4, rtol=1e-4)

    # Multi-tile + ragged-final-block path (B not a multiple of the tile).
    big_b = 300
    kx2, kc2 = jax.random.split(kc)
    xb = jax.random.normal(kx2, (big_b, input_size), jnp.float32)
    cb = jax.random.normal(kc2, (big_b, input_size), jnp.float32)
    refb = ref_fwd(xb, cb)
    outb = jax.block_until_ready(simple_semantic_relevance(xb, cb, w1, b1, w2, b2))
    assert outb.shape == (big_b, 1)
    assert jnp.allclose(outb, refb, atol=1e-4, rtol=1e-4)

    # bf16 activations arriving from the caller -> bf16 MXU inputs, f32 accumulation.
    out_bf16 = jax.block_until_ready(
        simple_semantic_relevance(xb.astype(jnp.bfloat16), cb.astype(jnp.bfloat16),
                                  w1, b1, w2, b2))
    assert out_bf16.shape == (big_b, 1)
    assert jnp.allclose(out_bf16, refb, atol=1e-1, rtol=1e-1)

    print("KERNEL_OK")
</pallas_src>

<mosaic_0001>
module attributes {stable_mosaic.version = 11 : i64} {
  func.func @_mlp_kernel(%arg0: i32, %arg1: memref<128x16xf32, #tpu.memory_space<vmem>>, %arg2: memref<128x16xf32, #tpu.memory_space<vmem>>, %arg3: memref<16x128xf32, #tpu.memory_space<vmem>>, %arg4: memref<16x128xf32, #tpu.memory_space<vmem>>, %arg5: memref<1x128xf32, #tpu.memory_space<vmem>>, %arg6: memref<128x1xf32, #tpu.memory_space<vmem>>, %arg7: memref<1xf32, #tpu.memory_space<smem>>, %arg8: memref<1x128xf32, #tpu.memory_space<vmem>>) attributes {dimension_semantics = [#tpu.dimension_semantics<parallel>], iteration_bounds = array<i64: 1>, scalar_prefetch = 0 : i64, scratch_operands = 0 : i64, tpu.core_type = #tpu.core_type<tc>, window_params = [{transform_indices = @transform_0, window_bounds = array<i64: 128, 16>}, {transform_indices = @transform_1, window_bounds = array<i64: 128, 16>}, {pipeline_mode = #tpu.pipeline_mode<synchronous>, transform_indices = @transform_2, window_bounds = array<i64: 16, 128>}, {pipeline_mode = #tpu.pipeline_mode<synchronous>, transform_indices = @transform_3, window_bounds = array<i64: 16, 128>}, {pipeline_mode = #tpu.pipeline_mode<synchronous>, transform_indices = @transform_4, window_bounds = array<i64: 1, 128>}, {pipeline_mode = #tpu.pipeline_mode<synchronous>, transform_indices = @transform_5, window_bounds = array<i64: 128, 1>}, {transform_indices = @transform_6, window_bounds = array<i64: 1>}, {transform_indices = @transform_7, window_bounds = array<i64: 1, 128>}]} {
    %c0 = arith.constant 0 : index
    %c0_0 = arith.constant 0 : index
    %0 = vector.load %arg1[%c0, %c0_0] : memref<128x16xf32, #tpu.memory_space<vmem>>, vector<128x16xf32>
    %c0_1 = arith.constant 0 : index
    %c0_2 = arith.constant 0 : index
    %1 = vector.load %arg3[%c0_1, %c0_2] : memref<16x128xf32, #tpu.memory_space<vmem>>, vector<16x128xf32>
    %cst = arith.constant dense<0.000000e+00> : vector<128x128xf32>
    %2 = tpu.matmul %0, %1, %cst {dimension_numbers = #tpu.dot_dimension_numbers<[1], [0], [0], [1], [0, 0, 1, 1], [], []>} : vector<128x16xf32>, vector<16x128xf32>, vector<128x128xf32> -> vector<128x128xf32>
    %c0_3 = arith.constant 0 : index
    %c0_4 = arith.constant 0 : index
    %3 = vector.load %arg2[%c0_3, %c0_4] : memref<128x16xf32, #tpu.memory_space<vmem>>, vector<128x16xf32>
    %c0_5 = arith.constant 0 : index
    %c0_6 = arith.constant 0 : index
    %4 = vector.load %arg4[%c0_5, %c0_6] : memref<16x128xf32, #tpu.memory_space<vmem>>, vector<16x128xf32>
    %cst_7 = arith.constant dense<0.000000e+00> : vector<128x128xf32>
    %5 = tpu.matmul %3, %4, %cst_7 {dimension_numbers = #tpu.dot_dimension_numbers<[1], [0], [0], [1], [0, 0, 1, 1], [], []>} : vector<128x16xf32>, vector<16x128xf32>, vector<128x128xf32> -> vector<128x128xf32>
    %6 = arith.addf %2, %5 : vector<128x128xf32>
    %c0_8 = arith.constant 0 : index
    %c0_9 = arith.constant 0 : index
    %7 = vector.load %arg5[%c0_8, %c0_9] : memref<1x128xf32, #tpu.memory_space<vmem>>, vector<1x128xf32>
    %8 = vector.broadcast %7 : vector<1x128xf32> to vector<128x128xf32>
    %9 = arith.addf %6, %8 : vector<128x128xf32>
    %cst_10 = arith.constant 0.000000e+00 : f32
    %10 = vector.broadcast %cst_10 : f32 to vector<128x128xf32>
    %11 = arith.maximumf %9, %10 : vector<128x128xf32>
    %c0_11 = arith.constant 0 : index
    %c0_12 = arith.constant 0 : index
    %12 = vector.load %arg6[%c0_11, %c0_12] : memref<128x1xf32, #tpu.memory_space<vmem>>, vector<128x1xf32>
    %cst_13 = arith.constant dense<0.000000e+00> : vector<128x1xf32>
    %13 = tpu.matmul %11, %12, %cst_13 {dimension_numbers = #tpu.dot_dimension_numbers<[1], [0], [0], [1], [0, 0, 1, 1], [], []>} : vector<128x128xf32>, vector<128x1xf32>, vector<128x1xf32> -> vector<128x1xf32>
    %14 = tpu.transpose %13, [1, 0] : vector<128x1xf32> -> vector<1x128xf32>
    %c0_14 = arith.constant 0 : index
    %15 = memref.load %arg7[%c0_14] : memref<1xf32, #tpu.memory_space<smem>>
    %16 = vector.broadcast %15 : f32 to vector<1x128xf32>
    %17 = arith.addf %14, %16 : vector<1x128xf32>
    %c0_15 = arith.constant 0 : index
    %c0_16 = arith.constant 0 : index
    %18 = vector.load %arg8[%c0_15, %c0_16] : memref<1x128xf32, #tpu.memory_space<vmem>>, vector<1x128xf32>
    tpu.vector_store %arg8[%c0_15, %c0_16], %17 {strides = array<i32>} : memref<1x128xf32, #tpu.memory_space<vmem>>, vector<1x128xf32>,
    return
  }
  func.func @transform_0(%arg0: i32) -> (i32, i32) {
    %c0_i32 = arith.constant 0 : i32
    %c0_i32_0 = arith.constant 0 : i32
    return %arg0, %c0_i32 : i32, i32
  }
  func.func @transform_1(%arg0: i32) -> (i32, i32) {
    %c0_i32 = arith.constant 0 : i32
    %c0_i32_0 = arith.constant 0 : i32
    return %arg0, %c0_i32 : i32, i32
  }
  func.func @transform_2(%arg0: i32) -> (i32, i32) {
    %c0_i32 = arith.constant 0 : i32
    %c0_i32_0 = arith.constant 0 : i32
    %c0_i32_1 = arith.constant 0 : i32
    return %c0_i32, %c0_i32_0 : i32, i32
  }
  func.func @transform_3(%arg0: i32) -> (i32, i32) {
    %c0_i32 = arith.constant 0 : i32
    %c0_i32_0 = arith.constant 0 : i32
    %c0_i32_1 = arith.constant 0 : i32
    return %c0_i32, %c0_i32_0 : i32, i32
  }
  func.func @transform_4(%arg0: i32) -> (i32, i32) {
    %c0_i32 = arith.constant 0 : i32
    %c0_i32_0 = arith.constant 0 : i32
    %c0_i32_1 = arith.constant 0 : i32
    return %c0_i32, %c0_i32_0 : i32, i32
  }
  func.func @transform_5(%arg0: i32) -> (i32, i32) {
    %c0_i32 = arith.constant 0 : i32
    %c0_i32_0 = arith.constant 0 : i32
    %c0_i32_1 = arith.constant 0 : i32
    return %c0_i32, %c0_i32_0 : i32, i32
  }
  func.func @transform_6(%arg0: i32) -> i32 {
    %c0_i32 = arith.constant 0 : i32
    %c0_i32_0 = arith.constant 0 : i32
    return %c0_i32 : i32
  }
  func.func @transform_7(%arg0: i32) -> (i32, i32) {
    %c0_i32 = arith.constant 0 : i32
    %c0_i32_0 = arith.constant 0 : i32
    return %c0_i32, %arg0 : i32, i32
  }
}

</mosaic_0001>

<llo_original>
// kernel: tpu_custom_call.1
$region0: #{tpu_custom_call.1}
  #allocation0 [shape = 'u32[]', space=smem, size = 0x4, offset = 0x4, fixed_abs, tag = 'smem constant byte address 0x4 - core index']
  #allocation1 [shape = 'u32[144,128]{1,0:T(1,128)}', space=vmem, size = 0x12000, scoped, tag = 'internal scratch']
  #allocation2 [shape = 'f32[1]{0:T(128)S(6)}', space=smem, size = 0x200, scoped, tag = 'scoped memory for tpu_custom_call.1']
  %s0 = inlined_call_operand.vmem [shape: f32[2,16], index: 0, kind: input, shape index: {}]
  %s1 = inlined_call_operand.vmem [shape: f32[2,16], index: 1, kind: input, shape index: {}]
  %s2 = inlined_call_operand.vmem [shape: f32[16,128], index: 2, kind: input, shape index: {}]
  %s3 = inlined_call_operand.vmem [shape: f32[16,128], index: 3, kind: input, shape index: {}]
  %s4 = inlined_call_operand.vmem [shape: f32[1,128], index: 4, kind: input, shape index: {}]
  %s5 = inlined_call_operand.vmem [shape: f32[128,1], index: 5, kind: input, shape index: {}]
  %s6 = inlined_call_operand.<no memory space> [shape: f32[1], index: 6, kind: input, shape index: {}]
  %s7 = inlined_call_operand.hbm [shape: f32[1,128], index: 7, kind: output, shape index: {}]
  %s8 = sld [smem:[#allocation0]]
  $region38: #{tpu_custom_call.1} parent=0
    _
  %s10 = ssub.s32 1, %s8
  %s11 = scalar_select 0, %s10, %s8
  %12 = sst [smem:[#allocation2]] %s6
  $region1: #{tpu_custom_call.1} parent=0
    #allocation3 [shape = 'u8[512]{0}', space=vmem, size = 0x400, scoped, tag = 'output window, operand 0, single buffered']
    #allocation4 [shape = 's32[1]{0}', space=sflag, size = 0x4, scoped, tag = 'scoped memory for tpu_custom_call.1']
    %13 = vsyncpa [#allocation4], 0
    // Predicated region
    $region2: #{tpu_custom_call.1} parent=1 // pred_check
      _
    $region3: #{tpu_custom_call.1} parent=1 // pred_check_branch
      %15 = sbr.rel (0) target = $region5
    $region4: #{tpu_custom_call.1} parent=1 // pred_region
      _
    $region5: #{tpu_custom_call.1} parent=1 // pred_fallthru
      _
    // Predicated region
    $region6: #{tpu_custom_call.1} parent=1 // pred_check
      _
    $region7: #{tpu_custom_call.1} parent=1 // pred_check_branch
      %17 = sbr.rel (0) target = $region9
    $region8: #{tpu_custom_call.1} parent=1 // pred_region
      _
    $region9: #{tpu_custom_call.1} parent=1 // pred_fallthru
      _
    // Predicated region
    $region10: #{tpu_custom_call.1} parent=1 // pred_check
      _
    $region11: #{tpu_custom_call.1} parent=1 // pred_check_branch
      %19 = sbr.rel (0) target = $region13
    $region12: #{tpu_custom_call.1} parent=1 // pred_region
      _
    $region13: #{tpu_custom_call.1} parent=1 // pred_fallthru
      _
    // Predicated region
    $region14: #{tpu_custom_call.1} parent=1 // pred_check
      _
    $region15: #{tpu_custom_call.1} parent=1 // pred_check_branch
      %21 = sbr.rel (0) target = $region17
    $region16: #{tpu_custom_call.1} parent=1 // pred_region
      _
    $region17: #{tpu_custom_call.1} parent=1 // pred_fallthru
      _
    // Predicated region
    $region18: #{tpu_custom_call.1} parent=1 // pred_check
      _
    $region19: #{tpu_custom_call.1} parent=1 // pred_check_branch
      %23 = sbr.rel (0) target = $region21
    $region20: #{tpu_custom_call.1} parent=1 // pred_region
      _
    $region21: #{tpu_custom_call.1} parent=1 // pred_fallthru
      _
    // Predicated region
    $region22: #{tpu_custom_call.1} parent=1 // pred_check
      _
    $region23: #{tpu_custom_call.1} parent=1 // pred_check_branch
      %25 = sbr.rel (0) target = $region25
    $region24: #{tpu_custom_call.1} parent=1 // pred_region
      _
    $region25: #{tpu_custom_call.1} parent=1 // pred_fallthru
      _
    // Predicated region
    $region26: #{tpu_custom_call.1} parent=1 // pred_check
      _
    $region27: #{tpu_custom_call.1} parent=1 // pred_check_branch
      %27 = sbr.rel (0) target = $region29
    $region28: #{tpu_custom_call.1} parent=1 // pred_region
      _
    $region29: #{tpu_custom_call.1} parent=1 // pred_fallthru
      _
    %v28 = vld [vmem:[%s0] sm:$0xff]
    %v29 = vld [vmem:[%s0 + $0x8] sm:$0xff]
    %v30 = vld [vmem:[%s0 + $0x10] sm:$0xff]
    %v31 = vld [vmem:[%s0 + $0x18] sm:$0xff]
    %v32 = vld [vmem:[%s0 + $0x20] sm:$0xff]
    %v33 = vld [vmem:[%s0 + $0x28] sm:$0xff]
    %v34 = vld [vmem:[%s0 + $0x30] sm:$0xff]
    %v35 = vld [vmem:[%s0 + $0x38] sm:$0xff]
    %v36 = vld [vmem:[%s0 + $0x40] sm:$0xff]
    %v37 = vld [vmem:[%s0 + $0x48] sm:$0xff]
    %v38 = vld [vmem:[%s0 + $0x50] sm:$0xff]
    %v39 = vld [vmem:[%s0 + $0x58] sm:$0xff]
    %v40 = vld [vmem:[%s0 + $0x60] sm:$0xff]
    %v41 = vld [vmem:[%s0 + $0x68] sm:$0xff]
    %v42 = vld [vmem:[%s0 + $0x70] sm:$0xff]
    %v43 = vld [vmem:[%s0 + $0x78] sm:$0xff]
    %v44 = vld [vmem:[%s2] sm:$0xff]
    %v45 = vld [vmem:[%s2 + $0x8] sm:$0xff]
    %v46 = vld [vmem:[%s1] sm:$0xff]
    %v47 = vld [vmem:[%s1 + $0x8] sm:$0xff]
    %v48 = vld [vmem:[%s1 + $0x10] sm:$0xff]
    %v49 = vld [vmem:[%s1 + $0x18] sm:$0xff]
    %v50 = vld [vmem:[%s1 + $0x20] sm:$0xff]
    %v51 = vld [vmem:[%s1 + $0x28] sm:$0xff]
    %v52 = vld [vmem:[%s1 + $0x30] sm:$0xff]
    %v53 = vld [vmem:[%s1 + $0x38] sm:$0xff]
    %v54 = vld [vmem:[%s1 + $0x40] sm:$0xff]
    %v55 = vld [vmem:[%s1 + $0x48] sm:$0xff]
    %v56 = vld [vmem:[%s1 + $0x50] sm:$0xff]
    %v57 = vld [vmem:[%s1 + $0x58] sm:$0xff]
    %v58 = vld [vmem:[%s1 + $0x60] sm:$0xff]
    %v59 = vld [vmem:[%s1 + $0x68] sm:$0xff]
    %v60 = vld [vmem:[%s1 + $0x70] sm:$0xff]
    %v61 = vld [vmem:[%s1 + $0x78] sm:$0xff]
    %v62 = vld [vmem:[%s3] sm:$0xff]
    %v63 = vld [vmem:[%s3 + $0x8] sm:$0xff]
    %vm64 = vcmask 130048
    %v66 = vsel %vm64, %v46, 0
    %v69 = vsel %vm64, %v47, 0
    %v72 = vsel %vm64, %v48, 0
    %v75 = vsel %vm64, %v49, 0
    %v78 = vsel %vm64, %v50, 0
    %v81 = vsel %vm64, %v51, 0
    %v84 = vsel %vm64, %v52, 0
    %v87 = vsel %vm64, %v53, 0
    %v90 = vsel %vm64, %v54, 0
    %v93 = vsel %vm64, %v55, 0
    %v96 = vsel %vm64, %v56, 0
    %v99 = vsel %vm64, %v57, 0
    %v102 = vsel %vm64, %v58, 0
    %v105 = vsel %vm64, %v59, 0
    %v108 = vsel %vm64, %v60, 0
    %v111 = vsel %vm64, %v61, 0
    %113 = vmatprep.subr.mxu0 0.0
    %114 = vmatpush1.msra.mxu0 0.0
    %115 = vmatprep.subr.mxu0 0.0
    %116 = vmatpush1.msra.mxu0 0.0
    %117 = vmatprep.subr.mxu0 0.0
    %118 = vmatpush1.msra.mxu0 0.0
    %119 = vmatprep.subr.mxu0 0.0
    %120 = vmatpush1.msra.mxu0 0.0
    %121 = vmatprep.subr.mxu0 0.0
    %122 = vmatpush1.msra.mxu0 0.0
    %123 = vmatprep.subr.mxu0 0.0
    %124 = vmatpush1.msra.mxu0 0.0
    %125 = vmatprep.subr.mxu0 0.0
    %126 = vmatpush1.msra.mxu0 0.0
    %127 = vmatprep.subr.mxu0 0.0
    %128 = vmatpush1.msra.mxu0 0.0
    %129 = vmatprep.subr.mxu0 0.0
    %130 = vmatpush1.msra.mxu0 0.0
    %131 = vmatprep.subr.mxu0 0.0
    %132 = vmatpush1.msra.mxu0 0.0
    %133 = vmatprep.subr.mxu0 0.0
    %134 = vmatpush1.msra.mxu0 0.0
    %135 = vmatprep.subr.mxu0 0.0
    %136 = vmatpush1.msra.mxu0 0.0
    %137 = vmatprep.subr.mxu0 0.0
    %138 = vmatpush1.msra.mxu0 0.0
    %139 = vmatprep.subr.mxu0 0.0
    %140 = vmatpush1.msra.mxu0 0.0
    %141 = vmatprep.subr.mxu0 0.0
    %142 = vmatpush1.msra.mxu0 %v63
    %143 = vmatprep.subr.mxu0 0.0
    %144 = vmatpush1.msra.mxu0 %v62
    %145 = vmatprep.subr.mxu0 0.0
    %146 = vmatpush2.msra.mxu0 0.0
    %147 = vmatprep.subr.mxu0 0.0
    %148 = vmatpush2.msra.mxu0 0.0
    %149 = vmatprep.subr.mxu0 0.0
    %150 = vmatpush2.msra.mxu0 0.0
    %151 = vmatprep.subr.mxu0 0.0
    %152 = vmatpush2.msra.mxu0 0.0
    %153 = vmatprep.subr.mxu0 0.0
    %154 = vmatpush2.msra.mxu0 0.0
    %155 = vmatprep.subr.mxu0 0.0
    %156 = vmatpush2.msra.mxu0 0.0
    %157 = vmatprep.subr.mxu0 0.0
    %158 = vmatpush2.msra.mxu0 0.0
    %159 = vmatprep.subr.mxu0 0.0
    %160 = vmatpush2.msra.mxu0 0.0
    %161 = vmatprep.subr.mxu0 0.0
    %162 = vmatpush2.msra.mxu0 0.0
    %163 = vmatprep.subr.mxu0 0.0
    %164 = vmatpush2.msra.mxu0 0.0
    %165 = vmatprep.subr.mxu0 0.0
    %166 = vmatpush2.msra.mxu0 0.0
    %167 = vmatprep.subr.mxu0 0.0
    %168 = vmatpush2.msra.mxu0 0.0
    %169 = vmatprep.subr.mxu0 0.0
    %170 = vmatpush2.msra.mxu0 0.0
    %171 = vmatprep.subr.mxu0 0.0
    %172 = vmatpush2.msra.mxu0 0.0
    %173 = vmatprep.subr.mxu0 0.0
    %174 = vmatpush2.msra.mxu0 0.0
    %175 = vmatprep.subr.mxu0 0.0
    %176 = vmatpush2.msra.mxu0 0.0
    %177 = vmatprep.mubr.f32.mxu0 0.0
    %178 = vmatmul.mubr.f32.gmra.mxu0 %v66
    %v179 = vpop.f32.mrf.mxu0
    %v180 = vadd.f32 0.0, %v179
    %v181 = vpop.f32.mrf.mxu0
    %182 = vmatprep.mubr.f32.mxu0 0.0
    %183 = vmatmul.mubr.f32.gmra.mxu0 %v69
    %v184 = vpop.f32.mrf.mxu0
    %v185 = vadd.f32 0.0, %v184
    %v186 = vpop.f32.mrf.mxu0
    %187 = vmatprep.mubr.f32.mxu0 0.0
    %188 = vmatmul.mubr.f32.gmra.mxu0 %v72
    %v189 = vpop.f32.mrf.mxu0
    %v190 = vadd.f32 0.0, %v189
    %v191 = vpop.f32.mrf.mxu0
    %192 = vmatprep.mubr.f32.mxu0 0.0
    %193 = vmatmul.mubr.f32.gmra.mxu0 %v75
    %v194 = vpop.f32.mrf.mxu0
    %v195 = vadd.f32 0.0, %v194
    %v196 = vpop.f32.mrf.mxu0
    %197 = vmatprep.mubr.f32.mxu0 0.0
    %198 = vmatmul.mubr.f32.gmra.mxu0 %v78
    %v199 = vpop.f32.mrf.mxu0
    %v200 = vadd.f32 0.0, %v199
    %v201 = vpop.f32.mrf.mxu0
    %202 = vmatprep.mubr.f32.mxu0 0.0
    %203 = vmatmul.mubr.f32.gmra.mxu0 %v81
    %v204 = vpop.f32.mrf.mxu0
    %v205 = vadd.f32 0.0, %v204
    %v206 = vpop.f32.mrf.mxu0
    %207 = vmatprep.mubr.f32.mxu0 0.0
    %208 = vmatmul.mubr.f32.gmra.mxu0 %v84
    %v209 = vpop.f32.mrf.mxu0
    %v210 = vadd.f32 0.0, %v209
    %v211 = vpop.f32.mrf.mxu0
    %212 = vmatprep.mubr.f32.mxu0 0.0
    %213 = vmatmul.mubr.f32.gmra.mxu0 %v87
    %v214 = vpop.f32.mrf.mxu0
    %v215 = vadd.f32 0.0, %v214
    %v216 = vpop.f32.mrf.mxu0
    %217 = vmatprep.mubr.f32.mxu0 0.0
    %218 = vmatmul.mubr.f32.gmra.mxu0 %v90
    %v219 = vpop.f32.mrf.mxu0
    %v220 = vadd.f32 0.0, %v219
    %v221 = vpop.f32.mrf.mxu0
    %222 = vmatprep.mubr.f32.mxu0 0.0
    %223 = vmatmul.mubr.f32.gmra.mxu0 %v93
    %v224 = vpop.f32.mrf.mxu0
    %v225 = vadd.f32 0.0, %v224
    %v226 = vpop.f32.mrf.mxu0
    %227 = vmatprep.mubr.f32.mxu0 0.0
    %228 = vmatmul.mubr.f32.gmra.mxu0 %v96
    %v229 = vpop.f32.mrf.mxu0
    %v230 = vadd.f32 0.0, %v229
    %v231 = vpop.f32.mrf.mxu0
    %232 = vmatprep.mubr.f32.mxu0 0.0
    %233 = vmatmul.mubr.f32.gmra.mxu0 %v99
    %v234 = vpop.f32.mrf.mxu0
    %v235 = vadd.f32 0.0, %v234
    %v236 = vpop.f32.mrf.mxu0
    %237 = vmatprep.mubr.f32.mxu0 0.0
    %238 = vmatmul.mubr.f32.gmra.mxu0 %v102
    %v239 = vpop.f32.mrf.mxu0
    %v240 = vadd.f32 0.0, %v239
    %v241 = vpop.f32.mrf.mxu0
    %242 = vmatprep.mubr.f32.mxu0 0.0
    %243 = vmatmul.mubr.f32.gmra.mxu0 %v105
    %v244 = vpop.f32.mrf.mxu0
    %v245 = vadd.f32 0.0, %v244
    %v246 = vpop.f32.mrf.mxu0
    %247 = vmatprep.mubr.f32.mxu0 0.0
    %248 = vmatmul.mubr.f32.gmra.mxu0 %v108
    %v249 = vpop.f32.mrf.mxu0
    %v250 = vadd.f32 0.0, %v249
    %v251 = vpop.f32.mrf.mxu0
    %252 = vmatprep.mubr.f32.mxu0 0.0
    %253 = vmatmul.mubr.f32.gmra.mxu0 %v111
    %v254 = vpop.f32.mrf.mxu0
    %v255 = vadd.f32 0.0, %v254
    %v256 = vpop.f32.mrf.mxu0
    %257 = vdwg.mxu0
    %v259 = vsel %vm64, %v28, 0
    %v262 = vsel %vm64, %v29, 0
    %v265 = vsel %vm64, %v30, 0
    %v268 = vsel %vm64, %v31, 0
    %v271 = vsel %vm64, %v32, 0
    %v274 = vsel %vm64, %v33, 0
    %v277 = vsel %vm64, %v34, 0
    %v280 = vsel %vm64, %v35, 0
    %v283 = vsel %vm64, %v36, 0
    %v286 = vsel %vm64, %v37, 0
    %v289 = vsel %vm64, %v38, 0
    %v292 = vsel %vm64, %v39, 0
    %v295 = vsel %vm64, %v40, 0
    %v298 = vsel %vm64, %v41, 0
    %v301 = vsel %vm64, %v42, 0
    %v304 = vsel %vm64, %v43, 0
    %306 = vmatprep.subr.mxu0 0.0
    %307 = vmatpush1.msra.mxu0 0.0
    %308 = vmatprep.subr.mxu0 0.0
    %309 = vmatpush1.msra.mxu0 0.0
    %310 = vmatprep.subr.mxu0 0.0
    %311 = vmatpush1.msra.mxu0 0.0
    %312 = vmatprep.subr.mxu0 0.0
    %313 = vmatpush1.msra.mxu0 0.0
    %314 = vmatprep.subr.mxu0 0.0
    %315 = vmatpush1.msra.mxu0 0.0
    %316 = vmatprep.subr.mxu0 0.0
    %317 = vmatpush1.msra.mxu0 0.0
    %318 = vmatprep.subr.mxu0 0.0
    %319 = vmatpush1.msra.mxu0 0.0
    %320 = vmatprep.subr.mxu0 0.0
    %321 = vmatpush1.msra.mxu0 0.0
    %322 = vmatprep.subr.mxu0 0.0
    %323 = vmatpush1.msra.mxu0 0.0
    %324 = vmatprep.subr.mxu0 0.0
    %325 = vmatpush1.msra.mxu0 0.0
    %326 = vmatprep.subr.mxu0 0.0
    %327 = vmatpush1.msra.mxu0 0.0
    %328 = vmatprep.subr.mxu0 0.0
    %329 = vmatpush1.msra.mxu0 0.0
    %330 = vmatprep.subr.mxu0 0.0
    %331 = vmatpush1.msra.mxu0 0.0
    %332 = vmatprep.subr.mxu0 0.0
    %333 = vmatpush1.msra.mxu0 0.0
    %334 = vmatprep.subr.mxu0 0.0
    %335 = vmatpush1.msra.mxu0 %v45
    %336 = vmatprep.subr.mxu0 0.0
    %337 = vmatpush1.msra.mxu0 %v44
    %338 = vmatprep.subr.mxu0 0.0
    %339 = vmatpush2.msra.mxu0 0.0
    %340 = vmatprep.subr.mxu0 0.0
    %341 = vmatpush2.msra.mxu0 0.0
    %342 = vmatprep.subr.mxu0 0.0
    %343 = vmatpush2.msra.mxu0 0.0
    %344 = vmatprep.subr.mxu0 0.0
    %345 = vmatpush2.msra.mxu0 0.0
    %346 = vmatprep.subr.mxu0 0.0
    %347 = vmatpush2.msra.mxu0 0.0
    %348 = vmatprep.subr.mxu0 0.0
    %349 = vmatpush2.msra.mxu0 0.0
    %350 = vmatprep.subr.mxu0 0.0
    %351 = vmatpush2.msra.mxu0 0.0
    %352 = vmatprep.subr.mxu0 0.0
    %353 = vmatpush2.msra.mxu0 0.0
    %354 = vmatprep.subr.mxu0 0.0
    %355 = vmatpush2.msra.mxu0 0.0
    %356 = vmatprep.subr.mxu0 0.0
    %357 = vmatpush2.msra.mxu0 0.0
    %358 = vmatprep.subr.mxu0 0.0
    %359 = vmatpush2.msra.mxu0 0.0
    %360 = vmatprep.subr.mxu0 0.0
    %361 = vmatpush2.msra.mxu0 0.0
    %362 = vmatprep.subr.mxu0 0.0
    %363 = vmatpush2.msra.mxu0 0.0
    %364 = vmatprep.subr.mxu0 0.0
    %365 = vmatpush2.msra.mxu0 0.0
    %366 = vmatprep.subr.mxu0 0.0
    %367 = vmatpush2.msra.mxu0 0.0
    %368 = vmatprep.subr.mxu0 0.0
    %369 = vmatpush2.msra.mxu0 0.0
    %370 = vmatprep.mubr.f32.mxu0 0.0
    %371 = vmatmul.mubr.f32.gmra.mxu0 %v259
    %v372 = vpop.f32.mrf.mxu0
    %v373 = vadd.f32 %v180, %v372
    %v374 = vpop.f32.mrf.mxu0
    %375 = vmatprep.mubr.f32.mxu0 0.0
    %376 = vmatmul.mubr.f32.gmra.mxu0 %v262
    %v377 = vpop.f32.mrf.mxu0
    %v378 = vadd.f32 %v185, %v377
    %v379 = vpop.f32.mrf.mxu0
    %380 = vmatprep.mubr.f32.mxu0 0.0
    %381 = vmatmul.mubr.f32.gmra.mxu0 %v265
    %v382 = vpop.f32.mrf.mxu0
    %v383 = vadd.f32 %v190, %v382
    %v384 = vpop.f32.mrf.mxu0
    %385 = vmatprep.mubr.f32.mxu0 0.0
    %386 = vmatmul.mubr.f32.gmra.mxu0 %v268
    %v387 = vpop.f32.mrf.mxu0
    %v388 = vadd.f32 %v195, %v387
    %v389 = vpop.f32.mrf.mxu0
    %390 = vmatprep.mubr.f32.mxu0 0.0
    %391 = vmatmul.mubr.f32.gmra.mxu0 %v271
    %v392 = vpop.f32.mrf.mxu0
    %v393 = vadd.f32 %v200, %v392
    %v394 = vpop.f32.mrf.mxu0
    %395 = vmatprep.mubr.f32.mxu0 0.0
    %396 = vmatmul.mubr.f32.gmra.mxu0 %v274
    %v397 = vpop.f32.mrf.mxu0
    %v398 = vadd.f32 %v205, %v397
    %v399 = vpop.f32.mrf.mxu0
    %400 = vmatprep.mubr.f32.mxu0 0.0
    %401 = vmatmul.mubr.f32.gmra.mxu0 %v277
    %v402 = vpop.f32.mrf.mxu0
    %v403 = vadd.f32 %v210, %v402
    %v404 = vpop.f32.mrf.mxu0
    %405 = vmatprep.mubr.f32.mxu0 0.0
    %406 = vmatmul.mubr.f32.gmra.mxu0 %v280
    %v407 = vpop.f32.mrf.mxu0
    %v408 = vadd.f32 %v215, %v407
    %v409 = vpop.f32.mrf.mxu0
    %410 = vmatprep.mubr.f32.mxu0 0.0
    %411 = vmatmul.mubr.f32.gmra.mxu0 %v283
    %v412 = vpop.f32.mrf.mxu0
    %v413 = vadd.f32 %v220, %v412
    %v414 = vpop.f32.mrf.mxu0
    %415 = vmatprep.mubr.f32.mxu0 0.0
    %416 = vmatmul.mubr.f32.gmra.mxu0 %v286
    %v417 = vpop.f32.mrf.mxu0
    %v418 = vadd.f32 %v225, %v417
    %v419 = vpop.f32.mrf.mxu0
    %420 = vmatprep.mubr.f32.mxu0 0.0
    %421 = vmatmul.mubr.f32.gmra.mxu0 %v289
    %v422 = vpop.f32.mrf.mxu0
    %v423 = vadd.f32 %v230, %v422
    %v424 = vpop.f32.mrf.mxu0
    %425 = vmatprep.mubr.f32.mxu0 0.0
    %426 = vmatmul.mubr.f32.gmra.mxu0 %v292
    %v427 = vpop.f32.mrf.mxu0
    %v428 = vadd.f32 %v235, %v427
    %v429 = vpop.f32.mrf.mxu0
    %430 = vmatprep.mubr.f32.mxu0 0.0
    %431 = vmatmul.mubr.f32.gmra.mxu0 %v295
    %v432 = vpop.f32.mrf.mxu0
    %v433 = vadd.f32 %v240, %v432
    %v434 = vpop.f32.mrf.mxu0
    %435 = vmatprep.mubr.f32.mxu0 0.0
    %436 = vmatmul.mubr.f32.gmra.mxu0 %v298
    %v437 = vpop.f32.mrf.mxu0
    %v438 = vadd.f32 %v245, %v437
    %v439 = vpop.f32.mrf.mxu0
    %440 = vmatprep.mubr.f32.mxu0 0.0
    %441 = vmatmul.mubr.f32.gmra.mxu0 %v301
    %v442 = vpop.f32.mrf.mxu0
    %v443 = vadd.f32 %v250, %v442
    %v444 = vpop.f32.mrf.mxu0
    %445 = vmatprep.mubr.f32.mxu0 0.0
    %446 = vmatmul.mubr.f32.gmra.mxu0 %v304
    %v447 = vpop.f32.mrf.mxu0
    %v448 = vadd.f32 %v255, %v447
    %v449 = vpop.f32.mrf.mxu0
    %450 = vdwg.mxu0
    %v451 = vld [vmem:[%s4] sm:$0x1]
    %v453 = vlaneseq
    %v454 = vshrl.u32 %v453, 7
    %v455 = vsub.s32 0, %v454
    %v456 = vrot.slane %v451, %v455
    %v458 = vadd.f32 %v373, %v456
    %v459 = vadd.f32 %v378, %v456
    %v460 = vadd.f32 %v383, %v456
    %v461 = vadd.f32 %v388, %v456
    %v462 = vadd.f32 %v393, %v456
    %v463 = vadd.f32 %v398, %v456
    %v464 = vadd.f32 %v403, %v456
    %v465 = vadd.f32 %v408, %v456
    %v466 = vadd.f32 %v413, %v456
    %v467 = vadd.f32 %v418, %v456
    %v468 = vadd.f32 %v423, %v456
    %v469 = vadd.f32 %v428, %v456
    %v470 = vadd.f32 %v433, %v456
    %v471 = vadd.f32 %v438, %v456
    %v472 = vadd.f32 %v443, %v456
    %v473 = vadd.f32 %v448, %v456
    %v474 = vmax.f32 %v458, 0.0
    %v475 = vmax.f32 %v459, 0.0
    %v476 = vmax.f32 %v460, 0.0
    %v477 = vmax.f32 %v461, 0.0
    %v478 = vmax.f32 %v462, 0.0
    %v479 = vmax.f32 %v463, 0.0
    %v480 = vmax.f32 %v464, 0.0
    %v481 = vmax.f32 %v465, 0.0
    %v482 = vmax.f32 %v466, 0.0
    %v483 = vmax.f32 %v467, 0.0
    %v484 = vmax.f32 %v468, 0.0
    %v485 = vmax.f32 %v469, 0.0
    %v486 = vmax.f32 %v470, 0.0
    %v487 = vmax.f32 %v471, 0.0
    %v488 = vmax.f32 %v472, 0.0
    %v489 = vmax.f32 %v473, 0.0
    %v490 = vld [vmem:[%s5] sm:$0xff]
    %v491 = vld [vmem:[%s5 + $0x8] sm:$0xff]
    %v492 = vld [vmem:[%s5 + $0x10] sm:$0xff]
    %v493 = vld [vmem:[%s5 + $0x18] sm:$0xff]
    %v494 = vld [vmem:[%s5 + $0x20] sm:$0xff]
    %v495 = vld [vmem:[%s5 + $0x28] sm:$0xff]
    %v496 = vld [vmem:[%s5 + $0x30] sm:$0xff]
    %v497 = vld [vmem:[%s5 + $0x38] sm:$0xff]
    %v498 = vld [vmem:[%s5 + $0x40] sm:$0xff]
    %v499 = vld [vmem:[%s5 + $0x48] sm:$0xff]
    %v500 = vld [vmem:[%s5 + $0x50] sm:$0xff]
    %v501 = vld [vmem:[%s5 + $0x58] sm:$0xff]
    %v502 = vld [vmem:[%s5 + $0x60] sm:$0xff]
    %v503 = vld [vmem:[%s5 + $0x68] sm:$0xff]
    %v504 = vld [vmem:[%s5 + $0x70] sm:$0xff]
    %v505 = vld [vmem:[%s5 + $0x78] sm:$0xff]
    %506 = vmatprep.subr.mxu0 0.0
    %507 = vmatpush1.msra.mxu0 %v505
    %508 = vmatprep.subr.mxu0 0.0
    %509 = vmatpush1.msra.mxu0 %v504
    %510 = vmatprep.subr.mxu0 0.0
    %511 = vmatpush1.msra.mxu0 %v503
    %512 = vmatprep.subr.mxu0 0.0
    %513 = vmatpush1.msra.mxu0 %v502
    %514 = vmatprep.subr.mxu0 0.0
    %515 = vmatpush1.msra.mxu0 %v501
    %516 = vmatprep.subr.mxu0 0.0
    %517 = vmatpush1.msra.mxu0 %v500
    %518 = vmatprep.subr.mxu0 0.0
    %519 = vmatpush1.msra.mxu0 %v499
    %520 = vmatprep.subr.mxu0 0.0
    %521 = vmatpush1.msra.mxu0 %v498
    %522 = vmatprep.subr.mxu0 0.0
    %523 = vmatpush1.msra.mxu0 %v497
    %524 = vmatprep.subr.mxu0 0.0
    %525 = vmatpush1.msra.mxu0 %v496
    %526 = vmatprep.subr.mxu0 0.0
    %527 = vmatpush1.msra.mxu0 %v495
    %528 = vmatprep.subr.mxu0 0.0
    %529 = vmatpush1.msra.mxu0 %v494
    %530 = vmatprep.subr.mxu0 0.0
    %531 = vmatpush1.msra.mxu0 %v493
    %532 = vmatprep.subr.mxu0 0.0
    %533 = vmatpush1.msra.mxu0 %v492
    %534 = vmatprep.subr.mxu0 0.0
    %535 = vmatpush1.msra.mxu0 %v491
    %536 = vmatprep.subr.mxu0 0.0
    %537 = vmatpush1.msra.mxu0 %v490
    %538 = vmatprep.subr.mxu0 0.0
    %539 = vmatpush2.msra.mxu0 0.0
    %540 = vmatprep.subr.mxu0 0.0
    %541 = vmatpush2.msra.mxu0 0.0
    %542 = vmatprep.subr.mxu0 0.0
    %543 = vmatpush2.msra.mxu0 0.0
    %544 = vmatprep.subr.mxu0 0.0
    %545 = vmatpush2.msra.mxu0 0.0
    %546 = vmatprep.subr.mxu0 0.0
    %547 = vmatpush2.msra.mxu0 0.0
    %548 = vmatprep.subr.mxu0 0.0
    %549 = vmatpush2.msra.mxu0 0.0
    %550 = vmatprep.subr.mxu0 0.0
    %551 = vmatpush2.msra.mxu0 0.0
    %552 = vmatprep.subr.mxu0 0.0
    %553 = vmatpush2.msra.mxu0 0.0
    %554 = vmatprep.subr.mxu0 0.0
    %555 = vmatpush2.msra.mxu0 0.0
    %556 = vmatprep.subr.mxu0 0.0
    %557 = vmatpush2.msra.mxu0 0.0
    %558 = vmatprep.subr.mxu0 0.0
    %559 = vmatpush2.msra.mxu0 0.0
    %560 = vmatprep.subr.mxu0 0.0
    %561 = vmatpush2.msra.mxu0 0.0
    %562 = vmatprep.subr.mxu0 0.0
    %563 = vmatpush2.msra.mxu0 0.0
    %564 = vmatprep.subr.mxu0 0.0
    %565 = vmatpush2.msra.mxu0 0.0
    %566 = vmatprep.subr.mxu0 0.0
    %567 = vmatpush2.msra.mxu0 0.0
    %568 = vmatprep.subr.mxu0 0.0
    %569 = vmatpush2.msra.mxu0 0.0
    %570 = vmatprep.mubr.f32.mxu0 0.0
    %571 = vmatmul.mubr.f32.gmra.mxu0 %v474
    %v572 = vpop.f32.mrf.mxu0
    %v573 = vadd.f32 0.0, %v572
    %v574 = vpop.f32.mrf.mxu0
    %575 = vmatprep.mubr.f32.mxu0 0.0
    %576 = vmatmul.mubr.f32.gmra.mxu0 %v475
    %v577 = vpop.f32.mrf.mxu0
    %v578 = vadd.f32 0.0, %v577
    %v579 = vpop.f32.mrf.mxu0
    %580 = vmatprep.mubr.f32.mxu0 0.0
    %581 = vmatmul.mubr.f32.gmra.mxu0 %v476
    %v582 = vpop.f32.mrf.mxu0
    %v583 = vadd.f32 0.0, %v582
    %v584 = vpop.f32.mrf.mxu0
    %585 = vmatprep.mubr.f32.mxu0 0.0
    %586 = vmatmul.mubr.f32.gmra.mxu0 %v477
    %v587 = vpop.f32.mrf.mxu0
    %v588 = vadd.f32 0.0, %v587
    %v589 = vpop.f32.mrf.mxu0
    %590 = vmatprep.mubr.f32.mxu0 0.0
    %591 = vmatmul.mubr.f32.gmra.mxu0 %v478
    %v592 = vpop.f32.mrf.mxu0
    %v593 = vadd.f32 0.0, %v592
    %v594 = vpop.f32.mrf.mxu0
    %595 = vmatprep.mubr.f32.mxu0 0.0
    %596 = vmatmul.mubr.f32.gmra.mxu0 %v479
    %v597 = vpop.f32.mrf.mxu0
    %v598 = vadd.f32 0.0, %v597
    %v599 = vpop.f32.mrf.mxu0
    %600 = vmatprep.mubr.f32.mxu0 0.0
    %601 = vmatmul.mubr.f32.gmra.mxu0 %v480
    %v602 = vpop.f32.mrf.mxu0
    %v603 = vadd.f32 0.0, %v602
    %v604 = vpop.f32.mrf.mxu0
    %605 = vmatprep.mubr.f32.mxu0 0.0
    %606 = vmatmul.mubr.f32.gmra.mxu0 %v481
    %v607 = vpop.f32.mrf.mxu0
    %v608 = vadd.f32 0.0, %v607
    %v609 = vpop.f32.mrf.mxu0
    %610 = vmatprep.mubr.f32.mxu0 0.0
    %611 = vmatmul.mubr.f32.gmra.mxu0 %v482
    %v612 = vpop.f32.mrf.mxu0
    %v613 = vadd.f32 0.0, %v612
    %v614 = vpop.f32.mrf.mxu0
    %615 = vmatprep.mubr.f32.mxu0 0.0
    %616 = vmatmul.mubr.f32.gmra.mxu0 %v483
    %v617 = vpop.f32.mrf.mxu0
    %v618 = vadd.f32 0.0, %v617
    %v619 = vpop.f32.mrf.mxu0
    %620 = vmatprep.mubr.f32.mxu0 0.0
    %621 = vmatmul.mubr.f32.gmra.mxu0 %v484
    %v622 = vpop.f32.mrf.mxu0
    %v623 = vadd.f32 0.0, %v622
    %v624 = vpop.f32.mrf.mxu0
    %625 = vmatprep.mubr.f32.mxu0 0.0
    %626 = vmatmul.mubr.f32.gmra.mxu0 %v485
    %v627 = vpop.f32.mrf.mxu0
    %v628 = vadd.f32 0.0, %v627
    %v629 = vpop.f32.mrf.mxu0
    %630 = vmatprep.mubr.f32.mxu0 0.0
    %631 = vmatmul.mubr.f32.gmra.mxu0 %v486
    %v632 = vpop.f32.mrf.mxu0
    %v633 = vadd.f32 0.0, %v632
    %v634 = vpop.f32.mrf.mxu0
    %635 = vmatprep.mubr.f32.mxu0 0.0
    %636 = vmatmul.mubr.f32.gmra.mxu0 %v487
    %v637 = vpop.f32.mrf.mxu0
    %v638 = vadd.f32 0.0, %v637
    %v639 = vpop.f32.mrf.mxu0
    %640 = vmatprep.mubr.f32.mxu0 0.0
    %641 = vmatmul.mubr.f32.gmra.mxu0 %v488
    %v642 = vpop.f32.mrf.mxu0
    %v643 = vadd.f32 0.0, %v642
    %v644 = vpop.f32.mrf.mxu0
    %645 = vmatprep.mubr.f32.mxu0 0.0
    %646 = vmatmul.mubr.f32.gmra.mxu0 %v489
    %v647 = vpop.f32.mrf.mxu0
    %v648 = vadd.f32 0.0, %v647
    %v649 = vpop.f32.mrf.mxu0
    %650 = vdwg.mxu0
    %651 = vxpose.xlu0.b32.start [1/16] %v573, 128
    %652 = vxpose.xlu0.b32.cont [2/16] %v578, 128
    %653 = vxpose.xlu0.b32.cont [3/16] %v583, 128
    %654 = vxpose.xlu0.b32.cont [4/16] %v588, 128
    %655 = vxpose.xlu0.b32.cont [5/16] %v593, 128
    %656 = vxpose.xlu0.b32.cont [6/16] %v598, 128
    %657 = vxpose.xlu0.b32.cont [7/16] %v603, 128
    %658 = vxpose.xlu0.b32.cont [8/16] %v608, 128
    %659 = vxpose.xlu0.b32.cont [9/16] %v613, 128
    %660 = vxpose.xlu0.b32.cont [10/16] %v618, 128
    %661 = vxpose.xlu0.b32.cont [11/16] %v623, 128
    %662 = vxpose.xlu0.b32.cont [12/16] %v628, 128
    %663 = vxpose.xlu0.b32.cont [13/16] %v633, 128
    %664 = vxpose.xlu0.b32.cont [14/16] %v638, 128
    %665 = vxpose.xlu0.b32.cont [15/16] %v643, 128
    %666 = vxpose.xlu0.b32.end [16/16] %v648, 128
    %v667 = vpop.trf.xlu0
    %v668 = vpop.trf.xlu0
    %v669 = vpop.trf.xlu0
    %v670 = vpop.trf.xlu0
    %v671 = vpop.trf.xlu0
    %v672 = vpop.trf.xlu0
    %v673 = vpop.trf.xlu0
    %v674 = vpop.trf.xlu0
    %v675 = vpop.trf.xlu0
    %v676 = vpop.trf.xlu0
    %v677 = vpop.trf.xlu0
    %v678 = vpop.trf.xlu0
    %v679 = vpop.trf.xlu0
    %v680 = vpop.trf.xlu0
    %v681 = vpop.trf.xlu0
    %v682 = vpop.trf.xlu0
    %s683 = sld [smem:[#allocation2]]
    %v684 = vstv %s683
    %v685 = vadd.f32 %v667, %v684
    %686 = vst [vmem:[#allocation3] sm:$0x1] %v685
    // Predicated region
    $region30: #{tpu_custom_call.1} parent=1 // pred_check
      _
    $region31: #{tpu_custom_call.1} parent=1 // pred_check_branch
      %688 = sbr.rel (0) target = $region33
    $region32: #{tpu_custom_call.1} parent=1 // pred_region
      %s690 = ssub.s32 16, 16
      %691 = vsyncadd [#allocation4], %s690
      %s693 = sshll.u32 [#allocation3], 4
      %s694 = int_to_ptr.vmem [resolvable:$true] %s693
      %696 = dma.vmem_to_hbm [thread:$0]  %s694, 16, %s7, [#allocation4]
    $region33: #{tpu_custom_call.1} parent=1 // pred_fallthru
      _
    // Predicated region
    $region34: #{tpu_custom_call.1} parent=1 // pred_check
      _
    $region35: #{tpu_custom_call.1} parent=1 // pred_check_branch
      %698 = sbr.rel (0) target = $region37
    $region36: #{tpu_custom_call.1} parent=1 // pred_region
      %699 = dma.done [#allocation4], 16
    $region37: #{tpu_custom_call.1} parent=1 // pred_fallthru
      _
    %700 = vsyncpa [#allocation4], 1

</llo_original>
